<compile_context>
chip_gen: v7x
topology: tpu7x:2x2x1
jax: 0.10.0
libtpu: 0.0.40
codegen_flags: <defaults>
</compile_context>

<pallas_src>
import math
import functools

import jax
import jax.numpy as jnp
from jax.experimental import pallas as pl
from jax.experimental.pallas import tpu as pltpu


def _noise_project_kernel(
    x_ref,      # (1, C, TN)   input x tile (flattened, padded spatial)
    side_ref,   # (1, S, TN)   side_info tile
    beff_ref,   # (1, 2C, 1)   per-batch effective bias (diffusion fold + bm + bc), f32
    wm_ref,     # (2C, C)      mid_projection 1x1-conv weight
    wc_ref,     # (2C, S)      cond_projection 1x1-conv weight
    wo_ref,     # (2C, C)      output_projection 1x1-conv weight
    bo_ref,     # (2C, 1)      output_projection bias, f32
    res_ref,    # (1, C, TN)   output: (x + residual) / sqrt(2)
    skip_ref,   # (1, C, TN)   output: skip
):
    x = x_ref[0]                                   # (C, TN)  compute dtype
    side = side_ref[0]                             # (S, TN)
    C = x.shape[0]

    # TODO(synk): forward_time (TemporalLearning) / forward_feature
    # (SpatialLearning) submodule sources are not provided in the reference
    # snippet, so they are applied as identity (itp_info / support unused).

    # mid + cond projections (f32 MXU accumulation), diffusion bias folded in:
    #   y2 = wm @ (x + d) + bm + wc @ side + bc = wm@x + wc@side + beff
    y2 = jnp.dot(wm_ref[...], x, preferred_element_type=jnp.float32)
    y2 = y2 + jnp.dot(wc_ref[...], side, preferred_element_type=jnp.float32)
    y2 = y2 + beff_ref[0]                          # broadcast (2C, 1) over lanes

    gate = y2[:C, :]
    filt = y2[C:, :]
    y3 = jax.nn.sigmoid(gate) * jnp.tanh(filt)     # (C, TN) f32, EUP

    # output_projection (1x1 conv): (2C, C) @ (C, TN)
    y_out = jnp.dot(wo_ref[...], y3.astype(wo_ref.dtype),
                    preferred_element_type=jnp.float32) + bo_ref[...]
    residual = y_out[:C, :]
    skip = y_out[C:, :]

    inv_sqrt2 = 1.0 / math.sqrt(2.0)
    res_ref[0] = ((x.astype(jnp.float32) + residual) * inv_sqrt2).astype(res_ref.dtype)
    skip_ref[0] = skip.astype(skip_ref.dtype)


def _pick_lane_tile(n_pad, c, s, in_bytes, out_bytes, vmem_budget_bytes):
    """Largest 128-multiple lane tile dividing n_pad within the VMEM budget.

    Budget counts the double-buffered per-lane traffic:
      2 * [ (C + S) * in_bytes  (x + side in)  +  2*C * out_bytes (res + skip out) ].
    """
    per_lane = 2 * ((c + s) * in_bytes + 2 * c * out_bytes)
    max_tn = max(128, (vmem_budget_bytes // per_lane) // 128 * 128)
    tn = min(n_pad, max_tn)
    tn = max(128, (tn // 128) * 128)
    while n_pad % tn != 0:          # n_pad is a multiple of 128 -> terminates
        tn -= 128
    return tn


def noise_project(x, side_info, diffusion_emb, itp_info, support, params, *,
                  compute_dtype=jnp.bfloat16, out_dtype=None,
                  vmem_budget_bytes=24 << 20):
    """Pallas implementation of NoiseProject.forward.

    x:             (B, C, K, L) float32
    side_info:     (B, S, K, L) float32
    diffusion_emb: (B, E)       float32
    Returns ((x + residual) / sqrt(2), skip), both (B, C, K, L).
    """
    del itp_info, support  # only consumed by the un-provided submodules (see TODO).
    if out_dtype is None:
        out_dtype = compute_dtype

    B, C, K, L = x.shape
    N = K * L
    S = side_info.shape[1]

    # --- fold diffusion projection + conv biases into a per-batch bias (f32) ---
    #   d[b]    = wd @ emb[b] + bd                       (C,)
    #   beff[b] = wm @ d[b] + bm + bc                    (2C,)
    d = diffusion_emb.astype(jnp.float32) @ params["wd"].T + params["bd"][:, 0]
    beff = d @ params["wm"].T + (params["bm"][:, 0] + params["bc"][:, 0])
    beff = beff.astype(jnp.float32).reshape(B, 2 * C, 1)

    wm = params["wm"].astype(compute_dtype)
    wc = params["wc"].astype(compute_dtype)
    wo = params["wo"].astype(compute_dtype)
    bo = params["bo"].astype(jnp.float32)

    # --- flatten spatial dims onto the lane axis and pad to a 128 multiple ---
    n_pad = ((N + 127) // 128) * 128
    x2 = x.reshape(B, C, N).astype(compute_dtype)
    side2 = side_info.reshape(B, S, N).astype(compute_dtype)
    if n_pad != N:
        pad = ((0, 0), (0, 0), (0, n_pad - N))
        x2 = jnp.pad(x2, pad)
        side2 = jnp.pad(side2, pad)

    in_bytes = jnp.dtype(compute_dtype).itemsize
    out_bytes = jnp.dtype(out_dtype).itemsize
    tn = _pick_lane_tile(n_pad, C, S, in_bytes, out_bytes, vmem_budget_bytes)
    nt = n_pad // tn

    # VMEM limit: double-buffered activation tiles + (double-buffered) weights
    # + headroom.  Floor at 32 MiB, stays comfortably under v7x's 64 MiB for
    # the default budget.
    act_ws = 2 * tn * ((C + S) * in_bytes + 2 * C * out_bytes)
    w_ws = 2 * (2 * C) * ((2 * C + S) * in_bytes + 2 * 4)   # wm+wc+wo, bo+beff (f32)
    vmem_limit = max(32 << 20, act_ws + w_ws + (8 << 20))

    out_shape = (
        jax.ShapeDtypeStruct((B, C, n_pad), out_dtype),
        jax.ShapeDtypeStruct((B, C, n_pad), out_dtype),
    )

    res, skip = pl.pallas_call(
        _noise_project_kernel,
        grid=(B, nt),
        in_specs=[
            pl.BlockSpec((1, C, tn), lambda b, t: (b, 0, t)),       # x
            pl.BlockSpec((1, S, tn), lambda b, t: (b, 0, t)),       # side_info
            pl.BlockSpec((1, 2 * C, 1), lambda b, t: (b, 0, 0)),    # beff (per batch)
            pl.BlockSpec((2 * C, C), lambda b, t: (0, 0)),          # wm
            pl.BlockSpec((2 * C, S), lambda b, t: (0, 0)),          # wc
            pl.BlockSpec((2 * C, C), lambda b, t: (0, 0)),          # wo
            pl.BlockSpec((2 * C, 1), lambda b, t: (0, 0)),          # bo
        ],
        out_specs=[
            pl.BlockSpec((1, C, tn), lambda b, t: (b, 0, t)),       # res
            pl.BlockSpec((1, C, tn), lambda b, t: (b, 0, t)),       # skip
        ],
        out_shape=out_shape,
        compiler_params=pltpu.CompilerParams(
            dimension_semantics=("parallel", "parallel"),
            vmem_limit_bytes=int(vmem_limit)),
    )(x2, side2, beff, wm, wc, wo, bo)

    res = res[:, :, :N].reshape(B, C, K, L)
    skip = skip[:, :, :N].reshape(B, C, K, L)
    return res, skip


def init_params(key, side_dim, channels, diffusion_embedding_dim):
    """Deterministic synthetic parameter init (shapes from NoiseProject.__init__)."""
    C, S, E = channels, side_dim, diffusion_embedding_dim
    ks = jax.random.split(key, 8)

    def w(k, shape, scale):
        return (scale * jax.random.normal(k, shape)).astype(jnp.float32)

    return dict(
        wd=w(ks[0], (C, E), 1.0 / math.sqrt(E)),        # nn.Linear(E, C)
        bd=w(ks[1], (C, 1), 0.02),
        wc=w(ks[2], (2 * C, S), math.sqrt(2.0 / S)),    # Conv1d_with_init(S, 2C, 1)
        bc=w(ks[3], (2 * C, 1), 0.02),
        wm=w(ks[4], (2 * C, C), math.sqrt(2.0 / C)),    # Conv1d_with_init(C, 2C, 1)
        bm=w(ks[5], (2 * C, 1), 0.02),
        wo=w(ks[6], (2 * C, C), math.sqrt(2.0 / C)),    # Conv1d_with_init(C, 2C, 1)
        bo=w(ks[7], (2 * C, 1), 0.02),
    )


def _reference(x, side_info, diffusion_emb, params):
    """Pure-JAX f32 reference of the same (submodules-as-identity) forward."""
    B, C, K, L = x.shape
    N = K * L
    S = side_info.shape[1]
    xf = x.reshape(B, C, N)
    sf = side_info.reshape(B, S, N)
    d = diffusion_emb @ params["wd"].T + params["bd"][:, 0]          # (B, C)
    y = xf + d[:, :, None]
    y_mid = jnp.einsum("oc,bcn->bon", params["wm"], y) + params["bm"][None]
    cond = jnp.einsum("os,bsn->bon", params["wc"], sf) + params["bc"][None]
    y2 = y_mid + cond
    gate, filt = y2[:, :C], y2[:, C:]
    y3 = jax.nn.sigmoid(gate) * jnp.tanh(filt)
    y_out = jnp.einsum("oc,bcn->bon", params["wo"], y3) + params["bo"][None]
    residual, skip = y_out[:, :C], y_out[:, C:]
    res = (xf + residual) / math.sqrt(2.0)
    return res.reshape(B, C, K, L), skip.reshape(B, C, K, L)


if __name__ == "__main__":
    key = jax.random.PRNGKey(0)
    # Small shapes; K*L = 126 is deliberately NOT a multiple of 128 to exercise
    # the lane-padding path.
    B, C, K, L = 2, 16, 7, 18      # batch, channels, target_dim (K), seq len (L)
    S, E = 8, 32                   # side_dim, diffusion_embedding_dim

    k1, k2, k3, k4, k5, kp = jax.random.split(key, 6)
    x = jax.random.normal(k1, (B, C, K, L), jnp.float32)
    side_info = jax.random.normal(k2, (B, S, K, L), jnp.float32)
    diffusion_emb = jax.random.normal(k3, (B, E), jnp.float32)
    itp_info = jax.random.normal(k4, (B, C, K, L), jnp.float32)
    support = [jax.random.uniform(k5, (K, K), jnp.float32)]

    params = init_params(kp, S, C, E)
    res_ref, skip_ref = _reference(x, side_info, diffusion_emb, params)

    # f32 path: tight check.
    fn_f32 = jax.jit(functools.partial(
        noise_project, compute_dtype=jnp.float32, out_dtype=jnp.float32))
    res32, skip32 = fn_f32(x, side_info, diffusion_emb, itp_info, support, params)
    jax.block_until_ready((res32, skip32))
    assert jnp.allclose(res32, res_ref, rtol=1e-5, atol=1e-5)
    assert jnp.allclose(skip32, skip_ref, rtol=1e-5, atol=1e-5)

    # bf16 I/O path (default, bandwidth-optimized): loose check vs f32 reference.
    fn_bf16 = jax.jit(functools.partial(noise_project, compute_dtype=jnp.bfloat16))
    res16, skip16 = fn_bf16(x, side_info, diffusion_emb, itp_info, support, params)
    jax.block_until_ready((res16, skip16))
    assert jnp.allclose(res16.astype(jnp.float32), res_ref, rtol=6e-2, atol=6e-2)
    assert jnp.allclose(skip16.astype(jnp.float32), skip_ref, rtol=6e-2, atol=6e-2)

    print("KERNEL_OK")
</pallas_src>

<mosaic_0001>
module attributes {stable_mosaic.version = 11 : i64} {
  func.func @_noise_project_kernel(%arg0: i32, %arg1: i32, %arg2: memref<1x16x128xf32, #tpu.memory_space<vmem>>, %arg3: memref<1x8x128xf32, #tpu.memory_space<vmem>>, %arg4: memref<1x32x1xf32, #tpu.memory_space<vmem>>, %arg5: memref<32x16xf32, #tpu.memory_space<vmem>>, %arg6: memref<32x8xf32, #tpu.memory_space<vmem>>, %arg7: memref<32x16xf32, #tpu.memory_space<vmem>>, %arg8: memref<32x1xf32, #tpu.memory_space<vmem>>, %arg9: memref<1x16x128xf32, #tpu.memory_space<vmem>>, %arg10: memref<1x16x128xf32, #tpu.memory_space<vmem>>) attributes {dimension_semantics = [#tpu.dimension_semantics<parallel>, #tpu.dimension_semantics<parallel>], iteration_bounds = array<i64: 2, 1>, scalar_prefetch = 0 : i64, scratch_operands = 0 : i64, tpu.core_type = #tpu.core_type<tc>, window_params = [{transform_indices = @transform_0, window_bounds = array<i64: 1, 16, 128>}, {transform_indices = @transform_1, window_bounds = array<i64: 1, 8, 128>}, {transform_indices = @transform_2, window_bounds = array<i64: 1, 32, 1>}, {pipeline_mode = #tpu.pipeline_mode<synchronous>, transform_indices = @transform_3, window_bounds = array<i64: 32, 16>}, {pipeline_mode = #tpu.pipeline_mode<synchronous>, transform_indices = @transform_4, window_bounds = array<i64: 32, 8>}, {pipeline_mode = #tpu.pipeline_mode<synchronous>, transform_indices = @transform_5, window_bounds = array<i64: 32, 16>}, {pipeline_mode = #tpu.pipeline_mode<synchronous>, transform_indices = @transform_6, window_bounds = array<i64: 32, 1>}, {transform_indices = @transform_7, window_bounds = array<i64: 1, 16, 128>}, {transform_indices = @transform_8, window_bounds = array<i64: 1, 16, 128>}]} {
    %c0 = arith.constant 0 : index
    %c0_0 = arith.constant 0 : index
    %c0_1 = arith.constant 0 : index
    %0 = vector.load %arg2[%c0, %c0_0, %c0_1] : memref<1x16x128xf32, #tpu.memory_space<vmem>>, vector<1x16x128xf32>
    %1 = vector.shape_cast %0 : vector<1x16x128xf32> to vector<16x128xf32>
    %c0_2 = arith.constant 0 : index
    %c0_3 = arith.constant 0 : index
    %c0_4 = arith.constant 0 : index
    %2 = vector.load %arg3[%c0_2, %c0_3, %c0_4] : memref<1x8x128xf32, #tpu.memory_space<vmem>>, vector<1x8x128xf32>
    %3 = vector.shape_cast %2 : vector<1x8x128xf32> to vector<8x128xf32>
    %c0_5 = arith.constant 0 : index
    %c0_6 = arith.constant 0 : index
    %4 = vector.load %arg5[%c0_5, %c0_6] : memref<32x16xf32, #tpu.memory_space<vmem>>, vector<32x16xf32>
    %cst = arith.constant dense<0.000000e+00> : vector<32x128xf32>
    %5 = tpu.matmul %4, %1, %cst {dimension_numbers = #tpu.dot_dimension_numbers<[1], [0], [0], [1], [0, 0, 1, 1], [], []>} : vector<32x16xf32>, vector<16x128xf32>, vector<32x128xf32> -> vector<32x128xf32>
    %c0_7 = arith.constant 0 : index
    %c0_8 = arith.constant 0 : index
    %6 = vector.load %arg6[%c0_7, %c0_8] : memref<32x8xf32, #tpu.memory_space<vmem>>, vector<32x8xf32>
    %cst_9 = arith.constant dense<0.000000e+00> : vector<32x128xf32>
    %7 = tpu.matmul %6, %3, %cst_9 {dimension_numbers = #tpu.dot_dimension_numbers<[1], [0], [0], [1], [0, 0, 1, 1], [], []>} : vector<32x8xf32>, vector<8x128xf32>, vector<32x128xf32> -> vector<32x128xf32>
    %8 = arith.addf %5, %7 : vector<32x128xf32>
    %c0_10 = arith.constant 0 : index
    %c0_11 = arith.constant 0 : index
    %c0_12 = arith.constant 0 : index
    %9 = vector.load %arg4[%c0_10, %c0_11, %c0_12] : memref<1x32x1xf32, #tpu.memory_space<vmem>>, vector<1x32x1xf32>
    %10 = vector.shape_cast %9 : vector<1x32x1xf32> to vector<32x1xf32>
    %11 = vector.broadcast %10 : vector<32x1xf32> to vector<32x128xf32>
    %12 = arith.addf %8, %11 : vector<32x128xf32>
    %13 = vector.extract_strided_slice %12 {offsets = [0, 0], sizes = [16, 128], strides = [1, 1]} : vector<32x128xf32> to vector<16x128xf32>
    %14 = vector.extract_strided_slice %12 {offsets = [16, 0], sizes = [16, 128], strides = [1, 1]} : vector<32x128xf32> to vector<16x128xf32>
    %15 = arith.negf %13 : vector<16x128xf32>
    %16 = math.exp %15 : vector<16x128xf32>
    %cst_13 = arith.constant 1.000000e+00 : f32
    %17 = vector.broadcast %cst_13 : f32 to vector<16x128xf32>
    %18 = arith.addf %17, %16 : vector<16x128xf32>
    %19 = arith.divf %17, %18 : vector<16x128xf32>
    %20 = math.tanh %14 : vector<16x128xf32>
    %21 = arith.mulf %19, %20 : vector<16x128xf32>
    %c0_14 = arith.constant 0 : index
    %c0_15 = arith.constant 0 : index
    %22 = vector.load %arg7[%c0_14, %c0_15] : memref<32x16xf32, #tpu.memory_space<vmem>>, vector<32x16xf32>
    %cst_16 = arith.constant dense<0.000000e+00> : vector<32x128xf32>
    %23 = tpu.matmul %22, %21, %cst_16 {dimension_numbers = #tpu.dot_dimension_numbers<[1], [0], [0], [1], [0, 0, 1, 1], [], []>} : vector<32x16xf32>, vector<16x128xf32>, vector<32x128xf32> -> vector<32x128xf32>
    %c0_17 = arith.constant 0 : index
    %c0_18 = arith.constant 0 : index
    %24 = vector.load %arg8[%c0_17, %c0_18] : memref<32x1xf32, #tpu.memory_space<vmem>>, vector<32x1xf32>
    %25 = vector.broadcast %24 : vector<32x1xf32> to vector<32x128xf32>
    %26 = arith.addf %23, %25 : vector<32x128xf32>
    %27 = vector.extract_strided_slice %26 {offsets = [0, 0], sizes = [16, 128], strides = [1, 1]} : vector<32x128xf32> to vector<16x128xf32>
    %28 = vector.extract_strided_slice %26 {offsets = [16, 0], sizes = [16, 128], strides = [1, 1]} : vector<32x128xf32> to vector<16x128xf32>
    %29 = arith.addf %1, %27 : vector<16x128xf32>
    %cst_19 = arith.constant 0.707106769 : f32
    %30 = vector.broadcast %cst_19 : f32 to vector<16x128xf32>
    %31 = arith.mulf %29, %30 : vector<16x128xf32>
    %c0_20 = arith.constant 0 : index
    %c0_21 = arith.constant 0 : index
    %c0_22 = arith.constant 0 : index
    %32 = vector.load %arg9[%c0_20, %c0_21, %c0_22] : memref<1x16x128xf32, #tpu.memory_space<vmem>>, vector<1x16x128xf32>
    %33 = vector.shape_cast %32 : vector<1x16x128xf32> to vector<16x128xf32>
    %34 = vector.shape_cast %31 : vector<16x128xf32> to vector<1x16x128xf32>
    tpu.vector_store %arg9[%c0_20, %c0_21, %c0_22], %34 {strides = array<i32>} : memref<1x16x128xf32, #tpu.memory_space<vmem>>, vector<1x16x128xf32>,
    %c0_23 = arith.constant 0 : index
    %c0_24 = arith.constant 0 : index
    %c0_25 = arith.constant 0 : index
    %35 = vector.load %arg10[%c0_23, %c0_24, %c0_25] : memref<1x16x128xf32, #tpu.memory_space<vmem>>, vector<1x16x128xf32>
    %36 = vector.shape_cast %35 : vector<1x16x128xf32> to vector<16x128xf32>
    %37 = vector.shape_cast %28 : vector<16x128xf32> to vector<1x16x128xf32>
    tpu.vector_store %arg10[%c0_23, %c0_24, %c0_25], %37 {strides = array<i32>} : memref<1x16x128xf32, #tpu.memory_space<vmem>>, vector<1x16x128xf32>,
    return
  }
  func.func @transform_0(%arg0: i32, %arg1: i32) -> (i32, i32, i32) {
    %c0_i32 = arith.constant 0 : i32
    %c0_i32_0 = arith.constant 0 : i32
    return %arg0, %c0_i32, %arg1 : i32, i32, i32
  }
  func.func @transform_1(%arg0: i32, %arg1: i32) -> (i32, i32, i32) {
    %c0_i32 = arith.constant 0 : i32
    %c0_i32_0 = arith.constant 0 : i32
    return %arg0, %c0_i32, %arg1 : i32, i32, i32
  }
  func.func @transform_2(%arg0: i32, %arg1: i32) -> (i32, i32, i32) {
    %c0_i32 = arith.constant 0 : i32
    %c0_i32_0 = arith.constant 0 : i32
    %c0_i32_1 = arith.constant 0 : i32
    return %arg0, %c0_i32, %c0_i32_0 : i32, i32, i32
  }
  func.func @transform_3(%arg0: i32, %arg1: i32) -> (i32, i32) {
    %c0_i32 = arith.constant 0 : i32
    %c0_i32_0 = arith.constant 0 : i32
    %c0_i32_1 = arith.constant 0 : i32
    return %c0_i32, %c0_i32_0 : i32, i32
  }
  func.func @transform_4(%arg0: i32, %arg1: i32) -> (i32, i32) {
    %c0_i32 = arith.constant 0 : i32
    %c0_i32_0 = arith.constant 0 : i32
    %c0_i32_1 = arith.constant 0 : i32
    return %c0_i32, %c0_i32_0 : i32, i32
  }
  func.func @transform_5(%arg0: i32, %arg1: i32) -> (i32, i32) {
    %c0_i32 = arith.constant 0 : i32
    %c0_i32_0 = arith.constant 0 : i32
    %c0_i32_1 = arith.constant 0 : i32
    return %c0_i32, %c0_i32_0 : i32, i32
  }
  func.func @transform_6(%arg0: i32, %arg1: i32) -> (i32, i32) {
    %c0_i32 = arith.constant 0 : i32
    %c0_i32_0 = arith.constant 0 : i32
    %c0_i32_1 = arith.constant 0 : i32
    return %c0_i32, %c0_i32_0 : i32, i32
  }
  func.func @transform_7(%arg0: i32, %arg1: i32) -> (i32, i32, i32) {
    %c0_i32 = arith.constant 0 : i32
    %c0_i32_0 = arith.constant 0 : i32
    return %arg0, %c0_i32, %arg1 : i32, i32, i32
  }
  func.func @transform_8(%arg0: i32, %arg1: i32) -> (i32, i32, i32) {
    %c0_i32 = arith.constant 0 : i32
    %c0_i32_0 = arith.constant 0 : i32
    return %arg0, %c0_i32, %arg1 : i32, i32, i32
  }
}

</mosaic_0001>

<llo_original>
// kernel: noise_project.1
$region0: #{noise_project.1}
  #allocation0 [shape = 'u32[]', space=smem, size = 0x4, offset = 0x4, fixed_abs, tag = 'smem constant byte address 0x4 - core index']
  #allocation1 [shape = 'u32[144,128]{1,0:T(1,128)}', space=vmem, size = 0x12000, scoped, tag = 'internal scratch']
  %s0 = inlined_call_operand.vmem [shape: f32[2,16,128], index: 0, kind: input, shape index: {}]
  %s1 = inlined_call_operand.vmem [shape: f32[2,8,128], index: 1, kind: input, shape index: {}]
  %s2 = inlined_call_operand.vmem [shape: f32[2,32,1], index: 2, kind: input, shape index: {}]
  %s3 = inlined_call_operand.vmem [shape: f32[32,16], index: 3, kind: input, shape index: {}]
  %s4 = inlined_call_operand.vmem [shape: f32[32,8], index: 4, kind: input, shape index: {}]
  %s5 = inlined_call_operand.vmem [shape: f32[32,16], index: 5, kind: input, shape index: {}]
  %s6 = inlined_call_operand.vmem [shape: f32[32,1], index: 6, kind: input, shape index: {}]
  %s7 = inlined_call_operand.vmem [shape: f32[2,16,128], index: 7, kind: output, shape index: {0}]
  %s8 = inlined_call_operand.vmem [shape: f32[2,16,128], index: 8, kind: output, shape index: {1}]
  %9 = xla_tuple %s7, %s8
  %s10 = sld [smem:[#allocation0]]
  $region69: #{noise_project.1} parent=0
    _
  %s12 = ssub.s32 1, %s10
  %s13 = scalar_select 0, %s12, %s10
  loop: start=0, step=1, limit=4
  $region2: #{noise_project.1} parent=0 // loop_pre_header
    _
  $region3: #{noise_project.1} parent=0 // loop_header
    %s15 = sphi 0, %s19
    %p16 = scmp.ge.s32.totalorder %s15, 4
    %s22 = sphi 0, %s34
    %s23 = sphi 0, %s30
    %s24 = sphi 0, %s22
    %s25 = sphi 0, %s23
    %s26 = sphi 0, %s24
    %s27 = sphi 0, %s25
    %s39 = sphi 0, %s41
    %s42 = sphi 0, %s39
    %s43 = sphi 0, %s42
    %s59 = sphi 0, %s43
    %s67 = sphi 0, %s69
    %s70 = sphi 0, %s67
    %s71 = sphi 0, %s70
    %s87 = sphi 0, %s71
    %s93 = sphi 0, %s95
    %s96 = sphi 0, %s93
    %s97 = sphi 0, %s96
    %s113 = sphi 0, %s97
    %s117 = sphi 0, %s117
    %s119 = sphi 0, %s117
    %s120 = sphi 0, %s119
    %s134 = sphi 0, %s120
    %s138 = sphi 0, %s138
    %s140 = sphi 0, %s138
    %s141 = sphi 0, %s140
    %s155 = sphi 0, %s141
    %s159 = sphi 0, %s159
    %s161 = sphi 0, %s159
    %s162 = sphi 0, %s161
    %s176 = sphi 0, %s162
    %s180 = sphi 0, %s180
    %s182 = sphi 0, %s180
    %s183 = sphi 0, %s182
    %s197 = sphi 0, %s183
    %s205 = sphi 0, %s207
    %s208 = sphi 0, %s205
    %s209 = sphi 0, %s208
    %s225 = sphi 0, %s209
    %s233 = sphi 0, %s235
    %s236 = sphi 0, %s233
    %s237 = sphi 0, %s236
    %s253 = sphi 0, %s237
  $region4: #{noise_project.1} parent=0 // loop_header_branch
    %18 = sbr.rel (%p16) target = $region8
  $region5: #{noise_project.1} parent=0 // loop_body
    %s20 = ssub.s32 %s15, 1
    %s21 = ssub.s32 %s15, 2
    %s28 = sadd.s32 1, %s23
    %p29 = scmp.ge.s32.totalorder %s28, 1
    %s30 = scalar_select %p29, 0, %s28
    %s31 = sadd.s32 1, %s22
    %s32 = scalar_select %p29, %s31, %s22
    %p33 = scmp.ge.s32.totalorder %s32, 2
    %s34 = scalar_select %p33, 0, %s32
    %s35 = ssub.s32 %s22, %s34
    %s36 = ssub.s32 %s23, %s30
    %s37 = sor.u32 %s35, %s36
    %p38 = scmp.eq.s32.totalorder %s37, 0
    %s40 = sadd.s32 %s39, 1
    %s41 = scalar_select %p38, %s39, %s40
    %p44 = pneg %p38
    %p45 = scmp.eq.s32.totalorder %s15, 1
    %p46 = por %p44, %p45
    %p47 = scmp.ne.s32.totalorder %s39, %s42
    %p48 = scmp.eq.s32.totalorder %s15, 0
    %p49 = por %p47, %p48
    %p50 = scmp.ne.s32.totalorder %s39, %s42
    %p51 = scmp.eq.s32.totalorder %s20, 1
    %p52 = por %p50, %p51
    %p53 = scmp.ne.s32.totalorder %s42, %s43
    %p54 = scmp.eq.s32.totalorder %s20, 0
    %p55 = por %p53, %p54
    %p56 = scmp.ne.s32.totalorder %s42, %s43
    %p57 = scmp.eq.s32.totalorder %s21, 1
    %p58 = por %p56, %p57
    %p60 = scmp.ne.s32.totalorder %s43, %s59
    %p61 = scmp.eq.s32.totalorder %s21, 0
    %p62 = por %p60, %p61
    %s63 = ssub.s32 %s22, %s34
    %s64 = ssub.s32 %s23, %s30
    %s65 = sor.u32 %s63, %s64
    %p66 = scmp.eq.s32.totalorder %s65, 0
    %s68 = sadd.s32 %s67, 1
    %s69 = scalar_select %p66, %s67, %s68
    %p72 = pneg %p66
    %p73 = scmp.eq.s32.totalorder %s15, 1
    %p74 = por %p72, %p73
    %p75 = scmp.ne.s32.totalorder %s67, %s70
    %p76 = scmp.eq.s32.totalorder %s15, 0
    %p77 = por %p75, %p76
    %p78 = scmp.ne.s32.totalorder %s67, %s70
    %p79 = scmp.eq.s32.totalorder %s20, 1
    %p80 = por %p78, %p79
    %p81 = scmp.ne.s32.totalorder %s70, %s71
    %p82 = scmp.eq.s32.totalorder %s20, 0
    %p83 = por %p81, %p82
    %p84 = scmp.ne.s32.totalorder %s70, %s71
    %p85 = scmp.eq.s32.totalorder %s21, 1
    %p86 = por %p84, %p85
    %p88 = scmp.ne.s32.totalorder %s71, %s87
    %p89 = scmp.eq.s32.totalorder %s21, 0
    %p90 = por %p88, %p89
    %s91 = ssub.s32 %s22, %s34
    %p92 = scmp.eq.s32.totalorder %s91, 0
    %s94 = sadd.s32 %s93, 1
    %s95 = scalar_select %p92, %s93, %s94
    %p98 = pneg %p92
    %p99 = scmp.eq.s32.totalorder %s15, 1
    %p100 = por %p98, %p99
    %p101 = scmp.ne.s32.totalorder %s93, %s96
    %p102 = scmp.eq.s32.totalorder %s15, 0
    %p103 = por %p101, %p102
    %p104 = scmp.ne.s32.totalorder %s93, %s96
    %p105 = scmp.eq.s32.totalorder %s20, 1
    %p106 = por %p104, %p105
    %p107 = scmp.ne.s32.totalorder %s96, %s97
    %p108 = scmp.eq.s32.totalorder %s20, 0
    %p109 = por %p107, %p108
    %p110 = scmp.ne.s32.totalorder %s96, %s97
    %p111 = scmp.eq.s32.totalorder %s21, 1
    %p112 = por %p110, %p111
    %p114 = scmp.ne.s32.totalorder %s97, %s113
    %p115 = scmp.eq.s32.totalorder %s21, 0
    %p116 = por %p114, %p115
    %s118 = sadd.s32 %s117, 1
    %p121 = scmp.eq.s32.totalorder %s15, 1
    %p122 = scmp.ne.s32.totalorder %s117, %s119
    %p123 = scmp.eq.s32.totalorder %s15, 0
    %p124 = por %p122, %p123
    %p125 = scmp.ne.s32.totalorder %s117, %s119
    %p126 = scmp.eq.s32.totalorder %s20, 1
    %p127 = por %p125, %p126
    %p128 = scmp.ne.s32.totalorder %s119, %s120
    %p129 = scmp.eq.s32.totalorder %s20, 0
    %p130 = por %p128, %p129
    %p131 = scmp.ne.s32.totalorder %s119, %s120
    %p132 = scmp.eq.s32.totalorder %s21, 1
    %p133 = por %p131, %p132
    %p135 = scmp.ne.s32.totalorder %s120, %s134
    %p136 = scmp.eq.s32.totalorder %s21, 0
    %p137 = por %p135, %p136
    %s139 = sadd.s32 %s138, 1
    %p142 = scmp.eq.s32.totalorder %s15, 1
    %p143 = scmp.ne.s32.totalorder %s138, %s140
    %p144 = scmp.eq.s32.totalorder %s15, 0
    %p145 = por %p143, %p144
    %p146 = scmp.ne.s32.totalorder %s138, %s140
    %p147 = scmp.eq.s32.totalorder %s20, 1
    %p148 = por %p146, %p147
    %p149 = scmp.ne.s32.totalorder %s140, %s141
    %p150 = scmp.eq.s32.totalorder %s20, 0
    %p151 = por %p149, %p150
    %p152 = scmp.ne.s32.totalorder %s140, %s141
    %p153 = scmp.eq.s32.totalorder %s21, 1
    %p154 = por %p152, %p153
    %p156 = scmp.ne.s32.totalorder %s141, %s155
    %p157 = scmp.eq.s32.totalorder %s21, 0
    %p158 = por %p156, %p157
    %s160 = sadd.s32 %s159, 1
    %p163 = scmp.eq.s32.totalorder %s15, 1
    %p164 = scmp.ne.s32.totalorder %s159, %s161
    %p165 = scmp.eq.s32.totalorder %s15, 0
    %p166 = por %p164, %p165
    %p167 = scmp.ne.s32.totalorder %s159, %s161
    %p168 = scmp.eq.s32.totalorder %s20, 1
    %p169 = por %p167, %p168
    %p170 = scmp.ne.s32.totalorder %s161, %s162
    %p171 = scmp.eq.s32.totalorder %s20, 0
    %p172 = por %p170, %p171
    %p173 = scmp.ne.s32.totalorder %s161, %s162
    %p174 = scmp.eq.s32.totalorder %s21, 1
    %p175 = por %p173, %p174
    %p177 = scmp.ne.s32.totalorder %s162, %s176
    %p178 = scmp.eq.s32.totalorder %s21, 0
    %p179 = por %p177, %p178
    %s181 = sadd.s32 %s180, 1
    %p184 = scmp.eq.s32.totalorder %s15, 1
    %p185 = scmp.ne.s32.totalorder %s180, %s182
    %p186 = scmp.eq.s32.totalorder %s15, 0
    %p187 = por %p185, %p186
    %p188 = scmp.ne.s32.totalorder %s180, %s182
    %p189 = scmp.eq.s32.totalorder %s20, 1
    %p190 = por %p188, %p189
    %p191 = scmp.ne.s32.totalorder %s182, %s183
    %p192 = scmp.eq.s32.totalorder %s20, 0
    %p193 = por %p191, %p192
    %p194 = scmp.ne.s32.totalorder %s182, %s183
    %p195 = scmp.eq.s32.totalorder %s21, 1
    %p196 = por %p194, %p195
    %p198 = scmp.ne.s32.totalorder %s183, %s197
    %p199 = scmp.eq.s32.totalorder %s21, 0
    %p200 = por %p198, %p199
    %s201 = ssub.s32 %s22, %s34
    %s202 = ssub.s32 %s23, %s30
    %s203 = sor.u32 %s201, %s202
    %p204 = scmp.eq.s32.totalorder %s203, 0
    %s206 = sadd.s32 %s205, 1
    %s207 = scalar_select %p204, %s205, %s206
    %p210 = pneg %p204
    %p211 = scmp.eq.s32.totalorder %s15, 1
    %p212 = por %p210, %p211
    %p213 = scmp.ne.s32.totalorder %s205, %s208
    %p214 = scmp.eq.s32.totalorder %s15, 0
    %p215 = por %p213, %p214
    %p216 = scmp.ne.s32.totalorder %s205, %s208
    %p217 = scmp.eq.s32.totalorder %s20, 1
    %p218 = por %p216, %p217
    %p219 = scmp.ne.s32.totalorder %s208, %s209
    %p220 = scmp.eq.s32.totalorder %s20, 0
    %p221 = por %p219, %p220
    %p222 = scmp.ne.s32.totalorder %s208, %s209
    %p223 = scmp.eq.s32.totalorder %s21, 1
    %p224 = por %p222, %p223
    %p226 = scmp.ne.s32.totalorder %s209, %s225
    %p227 = scmp.eq.s32.totalorder %s21, 0
    %p228 = por %p226, %p227
    %s229 = ssub.s32 %s22, %s34
    %s230 = ssub.s32 %s23, %s30
    %s231 = sor.u32 %s229, %s230
    %p232 = scmp.eq.s32.totalorder %s231, 0
    %s234 = sadd.s32 %s233, 1
    %s235 = scalar_select %p232, %s233, %s234
    %p238 = pneg %p232
    %p239 = scmp.eq.s32.totalorder %s15, 1
    %p240 = por %p238, %p239
    %p241 = scmp.ne.s32.totalorder %s233, %s236
    %p242 = scmp.eq.s32.totalorder %s15, 0
    %p243 = por %p241, %p242
    %p244 = scmp.ne.s32.totalorder %s233, %s236
    %p245 = scmp.eq.s32.totalorder %s20, 1
    %p246 = por %p244, %p245
    %p247 = scmp.ne.s32.totalorder %s236, %s237
    %p248 = scmp.eq.s32.totalorder %s20, 0
    %p249 = por %p247, %p248
    %p250 = scmp.ne.s32.totalorder %s236, %s237
    %p251 = scmp.eq.s32.totalorder %s21, 1
    %p252 = por %p250, %p251
    %p254 = scmp.ne.s32.totalorder %s237, %s253
    %p255 = scmp.eq.s32.totalorder %s21, 0
    %p256 = por %p254, %p255
    %p257 = scmp.le.s32.totalorder 1, %s15
    %p258 = scmp.lt.s32.totalorder %s15, 3
    %p259 = pnand %p257, %p258
    %p260 = pneg %p259
    // Predicated region
    $region9: #{noise_project.1} parent=5 // pred_check
      _
    $region10: #{noise_project.1} parent=5 // pred_check_branch
      %262 = sbr.rel (%p259) target = $region12
    $region11: #{noise_project.1} parent=5 // pred_region
      %s263 = ssub.s32 %s15, 1
      // Predicated region
      $region13: #{noise_project.1} parent=11 // pred_check
        %p264 = pneg %p130
      $region14: #{noise_project.1} parent=11 // pred_check_branch
        %266 = sbr.rel (%p264) target = $region16
      $region15: #{noise_project.1} parent=11 // pred_region
        _
      $region16: #{noise_project.1} parent=11 // pred_fallthru
        _
      // Predicated region
      $region17: #{noise_project.1} parent=11 // pred_check
        %p267 = pneg %p151
      $region18: #{noise_project.1} parent=11 // pred_check_branch
        %269 = sbr.rel (%p267) target = $region20
      $region19: #{noise_project.1} parent=11 // pred_region
        _
      $region20: #{noise_project.1} parent=11 // pred_fallthru
        _
      // Predicated region
      $region21: #{noise_project.1} parent=11 // pred_check
        %p270 = pneg %p172
      $region22: #{noise_project.1} parent=11 // pred_check_branch
        %272 = sbr.rel (%p270) target = $region24
      $region23: #{noise_project.1} parent=11 // pred_region
        _
      $region24: #{noise_project.1} parent=11 // pred_fallthru
        _
      // Predicated region
      $region25: #{noise_project.1} parent=11 // pred_check
        %p273 = pneg %p193
      $region26: #{noise_project.1} parent=11 // pred_check_branch
        %275 = sbr.rel (%p273) target = $region28
      $region27: #{noise_project.1} parent=11 // pred_region
        _
      $region28: #{noise_project.1} parent=11 // pred_fallthru
        _
    $region12: #{noise_project.1} parent=5 // pred_fallthru
      _
    %p276 = scmp.lt.s32.totalorder %s15, 2
    // Predicated region
    $region29: #{noise_project.1} parent=5 // pred_check
      %p277 = pneg %p276
    $region30: #{noise_project.1} parent=5 // pred_check_branch
      %279 = sbr.rel (%p277) target = $region32
    $region31: #{noise_project.1} parent=5 // pred_region
      // Predicated region
      $region33: #{noise_project.1} parent=31 // pred_check
        %p280 = pneg %p49
      $region34: #{noise_project.1} parent=31 // pred_check_branch
        %282 = sbr.rel (%p280) target = $region36
      $region35: #{noise_project.1} parent=31 // pred_region
        %p283 = scmp.lt.s32.totalorder %s22, 1
        %s284 = scalar_select %p283, %s22, 1
        %p285 = scmp.lt.s32.totalorder %s23, 0
        %s286 = scalar_select %p285, %s23, 0
        %s287 = smul.addr %s284, 2
        %s288 = sadd.s32 %s286, %s287
        %s289 = smul.addr %s288, 8
        %s290 = scalar_lea.vmem %s0, %s289
      $region36: #{noise_project.1} parent=31 // pred_fallthru
        _
      // Predicated region
      $region37: #{noise_project.1} parent=31 // pred_check
        %p291 = pneg %p77
      $region38: #{noise_project.1} parent=31 // pred_check_branch
        %293 = sbr.rel (%p291) target = $region40
      $region39: #{noise_project.1} parent=31 // pred_region
        %p294 = scmp.lt.s32.totalorder %s22, 1
        %s295 = scalar_select %p294, %s22, 1
        %p296 = scmp.lt.s32.totalorder %s23, 0
        %s297 = scalar_select %p296, %s23, 0
        %s298 = sadd.s32 %s297, %s295
        %s299 = smul.addr %s298, 8
        %s300 = scalar_lea.vmem %s1, %s299
      $region40: #{noise_project.1} parent=31 // pred_fallthru
        _
      // Predicated region
      $region41: #{noise_project.1} parent=31 // pred_check
        %p301 = pneg %p103
      $region42: #{noise_project.1} parent=31 // pred_check_branch
        %303 = sbr.rel (%p301) target = $region44
      $region43: #{noise_project.1} parent=31 // pred_region
        %p304 = scmp.lt.s32.totalorder %s22, 1
        %s305 = scalar_select %p304, %s22, 1
        %s306 = smul.addr %s305, 4
        %s307 = smul.addr %s306, 8
        %s308 = scalar_lea.vmem %s2, %s307
      $region44: #{noise_project.1} parent=31 // pred_fallthru
        _
    $region32: #{noise_project.1} parent=5 // pred_fallthru
      _
    %p309 = scmp.le.s32.totalorder 1, %s15
    %p310 = scmp.lt.s32.totalorder %s15, 3
    %p311 = pnand %p309, %p310
    %p312 = pneg %p311
    // Predicated region
    $region45: #{noise_project.1} parent=5 // pred_check
      _
    $region46: #{noise_project.1} parent=5 // pred_check_branch
      %314 = sbr.rel (%p311) target = $region48
    $region47: #{noise_project.1} parent=5 // pred_region
      %s315 = ssub.s32 %s15, 1
      %p316 = scmp.lt.s32.totalorder %s24, 1
      %s317 = scalar_select %p316, %s24, 1
      %p318 = scmp.lt.s32.totalorder %s25, 0
      %s319 = scalar_select %p318, %s25, 0
      %s320 = smul.addr %s317, 2
      %s321 = sadd.s32 %s319, %s320
      %s322 = smul.addr %s321, 8
      %s323 = scalar_lea.vmem %s0, %s322
      %p324 = pneg %p55
      %p325 = pneg %p52
      %p326 = scmp.lt.s32.totalorder %s24, 1
      %s327 = scalar_select %p326, %s24, 1
      %p328 = scmp.lt.s32.totalorder %s25, 0
      %s329 = scalar_select %p328, %s25, 0
      %s330 = sadd.s32 %s329, %s327
      %s331 = smul.addr %s330, 8
      %s332 = scalar_lea.vmem %s1, %s331
      %p333 = pneg %p83
      %p334 = pneg %p80
      %p335 = scmp.lt.s32.totalorder %s24, 1
      %s336 = scalar_select %p335, %s24, 1
      %s337 = smul.addr %s336, 4
      %s338 = smul.addr %s337, 8
      %s339 = scalar_lea.vmem %s2, %s338
      %p340 = pneg %p109
      %p341 = pneg %p106
      %p342 = pneg %p130
      %p343 = pneg %p127
      %p344 = pneg %p151
      %p345 = pneg %p148
      %p346 = pneg %p172
      %p347 = pneg %p169
      %p348 = pneg %p193
      %p349 = pneg %p190
      %p350 = pneg %p221
      %p351 = pneg %p218
      %p352 = scmp.lt.s32.totalorder %s24, 1
      %s353 = scalar_select %p352, %s24, 1
      %p354 = scmp.lt.s32.totalorder %s25, 0
      %s355 = scalar_select %p354, %s25, 0
      %s356 = smul.addr %s353, 2
      %s357 = sadd.s32 %s355, %s356
      %s358 = smul.addr %s357, 8
      %s359 = scalar_lea.vmem %s7, %s358
      %p360 = pneg %p249
      %p361 = pneg %p246
      %p362 = scmp.lt.s32.totalorder %s24, 1
      %s363 = scalar_select %p362, %s24, 1
      %p364 = scmp.lt.s32.totalorder %s25, 0
      %s365 = scalar_select %p364, %s25, 0
      %s366 = smul.addr %s363, 2
      %s367 = sadd.s32 %s365, %s366
      %s368 = smul.addr %s367, 8
      %s369 = scalar_lea.vmem %s8, %s368
      %p370 = scmp.lt.s32.totalorder %s24, 1
      %s371 = scalar_select %p370, %s24, 1
      %p372 = scmp.lt.s32.totalorder %s25, 0
      %s373 = scalar_select %p372, %s25, 0
      %s374 = smul.addr %s371, 2
      %s375 = sadd.s32 %s373, %s374
      %s376 = smul.addr %s375, 8
      %s377 = scalar_lea.vmem %s0, %s376
      %p378 = scmp.lt.s32.totalorder %s24, 1
      %s379 = scalar_select %p378, %s24, 1
      %p380 = scmp.lt.s32.totalorder %s25, 0
      %s381 = scalar_select %p380, %s25, 0
      %s382 = sadd.s32 %s381, %s379
      %s383 = smul.addr %s382, 8
      %s384 = scalar_lea.vmem %s1, %s383
      %p385 = scmp.lt.s32.totalorder %s24, 1
      %s386 = scalar_select %p385, %s24, 1
      %s387 = smul.addr %s386, 4
      %s388 = smul.addr %s387, 8
      %s389 = scalar_lea.vmem %s2, %s388
      %p390 = scmp.lt.s32.totalorder %s24, 1
      %s391 = scalar_select %p390, %s24, 1
      %p392 = scmp.lt.s32.totalorder %s25, 0
      %s393 = scalar_select %p392, %s25, 0
      %s394 = smul.addr %s391, 2
      %s395 = sadd.s32 %s393, %s394
      %s396 = smul.addr %s395, 8
      %s397 = scalar_lea.vmem %s7, %s396
      %p398 = scmp.lt.s32.totalorder %s24, 1
      %s399 = scalar_select %p398, %s24, 1
      %p400 = scmp.lt.s32.totalorder %s25, 0
      %s401 = scalar_select %p400, %s25, 0
      %s402 = smul.addr %s399, 2
      %s403 = sadd.s32 %s401, %s402
      %s404 = smul.addr %s403, 8
      %s405 = scalar_lea.vmem %s8, %s404
      %v406 = vld [vmem:[%s377] sm:$0xff]
      %v407 = vld [vmem:[%s377 + $0x8] sm:$0xff]
      %v408 = vld [vmem:[%s384] sm:$0xff]
      %v409 = vld [vmem:[%s3] sm:$0xff]
      %v410 = vld [vmem:[%s3 + $0x8] sm:$0xff]
      %v411 = vld [vmem:[%s3 + $0x10] sm:$0xff]
      %v412 = vld [vmem:[%s3 + $0x18] sm:$0xff]
      %v413 = vld [vmem:[%s4] sm:$0xff]
      %v414 = vld [vmem:[%s4 + $0x8] sm:$0xff]
      %v415 = vld [vmem:[%s4 + $0x10] sm:$0xff]
      %v416 = vld [vmem:[%s4 + $0x18] sm:$0xff]
      %vm417 = vcmask 64512
      %v419 = vsel %vm417, %v413, 0
      %v422 = vsel %vm417, %v414, 0
      %v425 = vsel %vm417, %v415, 0
      %v428 = vsel %vm417, %v416, 0
      %430 = vmatprep.subr.mxu0 0.0
      %431 = vmatpush1.msra.mxu0 %v408
      %432 = vmatprep.subr.mxu0 0.0
      %433 = vmatpush1.msra.mxu0 0.0
      %434 = vmatprep.subr.mxu0 0.0
      %435 = vmatpush1.msra.mxu0 0.0
      %436 = vmatprep.subr.mxu0 0.0
      %437 = vmatpush1.msra.mxu0 0.0
      %438 = vmatprep.subr.mxu0 0.0
      %439 = vmatpush1.msra.mxu0 0.0
      %440 = vmatprep.subr.mxu0 0.0
      %441 = vmatpush1.msra.mxu0 0.0
      %442 = vmatprep.subr.mxu0 0.0
      %443 = vmatpush1.msra.mxu0 0.0
      %444 = vmatprep.subr.mxu0 0.0
      %445 = vmatpush1.msra.mxu0 0.0
      %446 = vmatprep.subr.mxu0 0.0
      %447 = vmatpush1.msra.mxu0 0.0
      %448 = vmatprep.subr.mxu0 0.0
      %449 = vmatpush1.msra.mxu0 0.0
      %450 = vmatprep.subr.mxu0 0.0
      %451 = vmatpush1.msra.mxu0 0.0
      %452 = vmatprep.subr.mxu0 0.0
      %453 = vmatpush1.msra.mxu0 0.0
      %454 = vmatprep.subr.mxu0 0.0
      %455 = vmatpush1.msra.mxu0 0.0
      %456 = vmatprep.subr.mxu0 0.0
      %457 = vmatpush1.msra.mxu0 0.0
      %458 = vmatprep.subr.mxu0 0.0
      %459 = vmatpush1.msra.mxu0 0.0
      %460 = vmatprep.subr.mxu0 0.0
      %461 = vmatpush1.msra.mxu0 0.0
      %462 = vmatprep.subr.mxu0 0.0
      %463 = vmatpush1.msra.mxu0 0.0
      %464 = vmatprep.subr.mxu0 0.0
      %465 = vmatpush1.msra.mxu0 0.0
      %466 = vmatprep.subr.mxu0 0.0
      %467 = vmatpush1.msra.mxu0 0.0
      %468 = vmatprep.subr.mxu0 0.0
      %469 = vmatpush1.msra.mxu0 0.0
      %470 = vmatprep.subr.mxu0 0.0
      %471 = vmatpush1.msra.mxu0 0.0
      %472 = vmatprep.subr.mxu0 0.0
      %473 = vmatpush1.msra.mxu0 0.0
      %474 = vmatprep.subr.mxu0 0.0
      %475 = vmatpush1.msra.mxu0 0.0
      %476 = vmatprep.subr.mxu0 0.0
      %477 = vmatpush1.msra.mxu0 0.0
      %478 = vmatprep.subr.mxu0 0.0
      %479 = vmatpush1.msra.mxu0 0.0
      %480 = vmatprep.subr.mxu0 0.0
      %481 = vmatpush1.msra.mxu0 0.0
      %482 = vmatprep.subr.mxu0 0.0
      %483 = vmatpush1.msra.mxu0 0.0
      %484 = vmatprep.subr.mxu0 0.0
      %485 = vmatpush1.msra.mxu0 0.0
      %486 = vmatprep.subr.mxu0 0.0
      %487 = vmatpush1.msra.mxu0 0.0
      %488 = vmatprep.subr.mxu0 0.0
      %489 = vmatpush1.msra.mxu0 0.0
      %490 = vmatprep.subr.mxu0 0.0
      %491 = vmatpush1.msra.mxu0 0.0
      %492 = vmatprep.subr.mxu0 0.0
      %493 = vmatpush1.msra.mxu0 0.0
      %494 = vmatprep.mubr.f32.mxu0 0.0
      %495 = vmatmul.mubr.f32.gmra.mrb[0].mxu0 %v419
      %v496 = vpop.f32.mrb[0].mxu0
      %v497 = vadd.f32 0.0, %v496
      %v498 = vpop.f32.mrb[0].mxu0
      %499 = vmatprep.mubr.f32.mxu0 0.0
      %500 = vmatmul.mubr.f32.gmra.mrb[0].mxu0 %v422
      %v501 = vpop.f32.mrb[0].mxu0
      %v502 = vadd.f32 0.0, %v501
      %v503 = vpop.f32.mrb[0].mxu0
      %504 = vmatprep.mubr.f32.mxu0 0.0
      %505 = vmatmul.mubr.f32.gmra.mrb[0].mxu0 %v425
      %v506 = vpop.f32.mrb[0].mxu0
      %v507 = vadd.f32 0.0, %v506
      %v508 = vpop.f32.mrb[0].mxu0
      %509 = vmatprep.mubr.f32.mxu0 0.0
      %510 = vmatmul.mubr.f32.gmra.mrb[0].mxu0 %v428
      %v511 = vpop.f32.mrb[0].mxu0
      %v512 = vadd.f32 0.0, %v511
      %v513 = vpop.f32.mrb[0].mxu0
      %514 = vdwg.mxu0
      %vm515 = vcmask 130048
      %v517 = vsel %vm515, %v409, 0
      %v520 = vsel %vm515, %v410, 0
      %v523 = vsel %vm515, %v411, 0
      %v526 = vsel %vm515, %v412, 0
      %528 = vmatprep.subr.mxu0 0.0
      %529 = vmatpush1.msra.mxu0 %v406
      %530 = vmatprep.subr.mxu0 0.0
      %531 = vmatpush1.msra.mxu0 %v407
      %532 = vmatprep.subr.mxu0 0.0
      %533 = vmatpush1.msra.mxu0 0.0
      %534 = vmatprep.subr.mxu0 0.0
      %535 = vmatpush1.msra.mxu0 0.0
      %536 = vmatprep.subr.mxu0 0.0
      %537 = vmatpush1.msra.mxu0 0.0
      %538 = vmatprep.subr.mxu0 0.0
      %539 = vmatpush1.msra.mxu0 0.0
      %540 = vmatprep.subr.mxu0 0.0
      %541 = vmatpush1.msra.mxu0 0.0
      %542 = vmatprep.subr.mxu0 0.0
      %543 = vmatpush1.msra.mxu0 0.0
      %544 = vmatprep.subr.mxu0 0.0
      %545 = vmatpush1.msra.mxu0 0.0
      %546 = vmatprep.subr.mxu0 0.0
      %547 = vmatpush1.msra.mxu0 0.0
      %548 = vmatprep.subr.mxu0 0.0
      %549 = vmatpush1.msra.mxu0 0.0
      %550 = vmatprep.subr.mxu0 0.0
      %551 = vmatpush1.msra.mxu0 0.0
      %552 = vmatprep.subr.mxu0 0.0
      %553 = vmatpush1.msra.mxu0 0.0
      %554 = vmatprep.subr.mxu0 0.0
      %555 = vmatpush1.msra.mxu0 0.0
      %556 = vmatprep.subr.mxu0 0.0
      %557 = vmatpush1.msra.mxu0 0.0
      %558 = vmatprep.subr.mxu0 0.0
      %559 = vmatpush1.msra.mxu0 0.0
      %560 = vmatprep.subr.mxu0 0.0
      %561 = vmatpush1.msra.mxu0 0.0
      %562 = vmatprep.subr.mxu0 0.0
      %563 = vmatpush1.msra.mxu0 0.0
      %564 = vmatprep.subr.mxu0 0.0
      %565 = vmatpush1.msra.mxu0 0.0
      %566 = vmatprep.subr.mxu0 0.0
      %567 = vmatpush1.msra.mxu0 0.0
      %568 = vmatprep.subr.mxu0 0.0
      %569 = vmatpush1.msra.mxu0 0.0
      %570 = vmatprep.subr.mxu0 0.0
      %571 = vmatpush1.msra.mxu0 0.0
      %572 = vmatprep.subr.mxu0 0.0
      %573 = vmatpush1.msra.mxu0 0.0
      %574 = vmatprep.subr.mxu0 0.0
      %575 = vmatpush1.msra.mxu0 0.0
      %576 = vmatprep.subr.mxu0 0.0
      %577 = vmatpush1.msra.mxu0 0.0
      %578 = vmatprep.subr.mxu0 0.0
      %579 = vmatpush1.msra.mxu0 0.0
      %580 = vmatprep.subr.mxu0 0.0
      %581 = vmatpush1.msra.mxu0 0.0
      %582 = vmatprep.subr.mxu0 0.0
      %583 = vmatpush1.msra.mxu0 0.0
      %584 = vmatprep.subr.mxu0 0.0
      %585 = vmatpush1.msra.mxu0 0.0
      %586 = vmatprep.subr.mxu0 0.0
      %587 = vmatpush1.msra.mxu0 0.0
      %588 = vmatprep.subr.mxu0 0.0
      %589 = vmatpush1.msra.mxu0 0.0
      %590 = vmatprep.subr.mxu0 0.0
      %591 = vmatpush1.msra.mxu0 0.0
      %592 = vmatprep.mubr.f32.mxu0 0.0
      %593 = vmatmul.mubr.f32.gmra.mrb[0].mxu0 %v517
      %v594 = vpop.f32.mrb[0].mxu0
      %v595 = vadd.f32 %v497, %v594
      %v596 = vpop.f32.mrb[0].mxu0
      %597 = vmatprep.mubr.f32.mxu0 0.0
      %598 = vmatmul.mubr.f32.gmra.mrb[0].mxu0 %v520
      %v599 = vpop.f32.mrb[0].mxu0
      %v600 = vadd.f32 %v502, %v599
      %v601 = vpop.f32.mrb[0].mxu0
      %602 = vmatprep.mubr.f32.mxu0 0.0
      %603 = vmatmul.mubr.f32.gmra.mrb[0].mxu0 %v523
      %v604 = vpop.f32.mrb[0].mxu0
      %v605 = vadd.f32 %v507, %v604
      %v606 = vpop.f32.mrb[0].mxu0
      %607 = vmatprep.mubr.f32.mxu0 0.0
      %608 = vmatmul.mubr.f32.gmra.mrb[0].mxu0 %v526
      %v609 = vpop.f32.mrb[0].mxu0
      %v610 = vadd.f32 %v512, %v609
      %v611 = vpop.f32.mrb[0].mxu0
      %612 = vdwg.mxu0
      %v613 = vld [vmem:[%s389] sm:$0xff]
      %v614 = vld [vmem:[%s389 + $0x8] sm:$0xff]
      %v615 = vld [vmem:[%s389 + $0x10] sm:$0xff]
      %v616 = vld [vmem:[%s389 + $0x18] sm:$0xff]
      %618 = vset.pattern.permute.xlu0 0
      %619 = vperm.xlu0 %618, %v613
      %v620 = vpop.permute.xlu0 %619
      %623 = vset.pattern.permute.xlu0 0
      %624 = vperm.xlu0 %623, %v614
      %v625 = vpop.permute.xlu0 %624
      %628 = vset.pattern.permute.xlu0 0
      %629 = vperm.xlu0 %628, %v615
      %v630 = vpop.permute.xlu0 %629
      %633 = vset.pattern.permute.xlu0 0
      %634 = vperm.xlu0 %633, %v616
      %v635 = vpop.permute.xlu0 %634
      %v637 = vadd.f32 %v595, %v620
      %v638 = vadd.f32 %v600, %v625
      %v639 = vadd.f32 %v605, %v630
      %v640 = vadd.f32 %v610, %v635
      %v641 = vxor.u32 %v637, 2147483648
      %v642 = vxor.u32 %v638, 2147483648
      %v643 = vmul.f32 %v641, 1.442695
      %v644 = vpow.pop %v643
      %v645 = vmul.f32 %v642, 1.442695
      %v646 = vpow.pop %v645
      %v647 = vadd.f32 %v644, 1.0
      %v648 = vadd.f32 %v646, 1.0
      %v649 = vrcp.pop %v647
      %v650 = vmul.f32 1.0, %v649
      %v651 = vrcp.pop %v648
      %v652 = vmul.f32 1.0, %v651
      %v653 = vtanh.pop %v639
      %v654 = vtanh.pop %v640
      %v655 = vmul.f32 %v650, %v653
      %v656 = vmul.f32 %v652, %v654
      %v657 = vld [vmem:[%s5] sm:$0xff]
      %v658 = vld [vmem:[%s5 + $0x8] sm:$0xff]
      %v659 = vld [vmem:[%s5 + $0x10] sm:$0xff]
      %v660 = vld [vmem:[%s5 + $0x18] sm:$0xff]
      %v661 = vld [vmem:[%s6] sm:$0xff]
      %v662 = vld [vmem:[%s6 + $0x8] sm:$0xff]
      %v663 = vld [vmem:[%s6 + $0x10] sm:$0xff]
      %v664 = vld [vmem:[%s6 + $0x18] sm:$0xff]
      %666 = vset.pattern.permute.xlu0 0
      %667 = vperm.xlu0 %666, %v661
      %v668 = vpop.permute.xlu0 %667
      %671 = vset.pattern.permute.xlu0 0
      %672 = vperm.xlu0 %671, %v662
      %v673 = vpop.permute.xlu0 %672
      %676 = vset.pattern.permute.xlu0 0
      %677 = vperm.xlu0 %676, %v663
      %v678 = vpop.permute.xlu0 %677
      %681 = vset.pattern.permute.xlu0 0
      %682 = vperm.xlu0 %681, %v664
      %v683 = vpop.permute.xlu0 %682
      %v686 = vsel %vm515, %v657, 0
      %v689 = vsel %vm515, %v658, 0
      %v692 = vsel %vm515, %v659, 0
      %v695 = vsel %vm515, %v660, 0
      %697 = vmatprep.subr.mxu0 0.0
      %698 = vmatpush1.msra.mxu0 %v655
      %699 = vmatprep.subr.mxu0 0.0
      %700 = vmatpush1.msra.mxu0 %v656
      %701 = vmatprep.subr.mxu0 0.0
      %702 = vmatpush1.msra.mxu0 0.0
      %703 = vmatprep.subr.mxu0 0.0
      %704 = vmatpush1.msra.mxu0 0.0
      %705 = vmatprep.subr.mxu0 0.0
      %706 = vmatpush1.msra.mxu0 0.0
      %707 = vmatprep.subr.mxu0 0.0
      %708 = vmatpush1.msra.mxu0 0.0
      %709 = vmatprep.subr.mxu0 0.0
      %710 = vmatpush1.msra.mxu0 0.0
      %711 = vmatprep.subr.mxu0 0.0
      %712 = vmatpush1.msra.mxu0 0.0
      %713 = vmatprep.subr.mxu0 0.0
      %714 = vmatpush1.msra.mxu0 0.0
      %715 = vmatprep.subr.mxu0 0.0
      %716 = vmatpush1.msra.mxu0 0.0
      %717 = vmatprep.subr.mxu0 0.0
      %718 = vmatpush1.msra.mxu0 0.0
      %719 = vmatprep.subr.mxu0 0.0
      %720 = vmatpush1.msra.mxu0 0.0
      %721 = vmatprep.subr.mxu0 0.0
      %722 = vmatpush1.msra.mxu0 0.0
      %723 = vmatprep.subr.mxu0 0.0
      %724 = vmatpush1.msra.mxu0 0.0
      %725 = vmatprep.subr.mxu0 0.0
      %726 = vmatpush1.msra.mxu0 0.0
      %727 = vmatprep.subr.mxu0 0.0
      %728 = vmatpush1.msra.mxu0 0.0
      %729 = vmatprep.subr.mxu0 0.0
      %730 = vmatpush1.msra.mxu0 0.0
      %731 = vmatprep.subr.mxu0 0.0
      %732 = vmatpush1.msra.mxu0 0.0
      %733 = vmatprep.subr.mxu0 0.0
      %734 = vmatpush1.msra.mxu0 0.0
      %735 = vmatprep.subr.mxu0 0.0
      %736 = vmatpush1.msra.mxu0 0.0
      %737 = vmatprep.subr.mxu0 0.0
      %738 = vmatpush1.msra.mxu0 0.0
      %739 = vmatprep.subr.mxu0 0.0
      %740 = vmatpush1.msra.mxu0 0.0
      %741 = vmatprep.subr.mxu0 0.0
      %742 = vmatpush1.msra.mxu0 0.0
      %743 = vmatprep.subr.mxu0 0.0
      %744 = vmatpush1.msra.mxu0 0.0
      %745 = vmatprep.subr.mxu0 0.0
      %746 = vmatpush1.msra.mxu0 0.0
      %747 = vmatprep.subr.mxu0 0.0
      %748 = vmatpush1.msra.mxu0 0.0
      %749 = vmatprep.subr.mxu0 0.0
      %750 = vmatpush1.msra.mxu0 0.0
      %751 = vmatprep.subr.mxu0 0.0
      %752 = vmatpush1.msra.mxu0 0.0
      %753 = vmatprep.subr.mxu0 0.0
      %754 = vmatpush1.msra.mxu0 0.0
      %755 = vmatprep.subr.mxu0 0.0
      %756 = vmatpush1.msra.mxu0 0.0
      %757 = vmatprep.subr.mxu0 0.0
      %758 = vmatpush1.msra.mxu0 0.0
      %759 = vmatprep.subr.mxu0 0.0
      %760 = vmatpush1.msra.mxu0 0.0
      %761 = vmatprep.mubr.f32.mxu0 0.0
      %762 = vmatmul.mubr.f32.gmra.mrb[0].mxu0 %v686
      %v763 = vpop.f32.mrb[0].mxu0
      %v764 = vadd.f32 %v668, %v763
      %v765 = vpop.f32.mrb[0].mxu0
      %766 = vmatprep.mubr.f32.mxu0 0.0
      %767 = vmatmul.mubr.f32.gmra.mrb[0].mxu0 %v689
      %v768 = vpop.f32.mrb[0].mxu0
      %v769 = vadd.f32 %v673, %v768
      %v770 = vpop.f32.mrb[0].mxu0
      %771 = vmatprep.mubr.f32.mxu0 0.0
      %772 = vmatmul.mubr.f32.gmra.mrb[0].mxu0 %v692
      %v773 = vpop.f32.mrb[0].mxu0
      %v774 = vadd.f32 %v678, %v773
      %v775 = vpop.f32.mrb[0].mxu0
      %776 = vmatprep.mubr.f32.mxu0 0.0
      %777 = vmatmul.mubr.f32.gmra.mrb[0].mxu0 %v695
      %v778 = vpop.f32.mrb[0].mxu0
      %v779 = vadd.f32 %v683, %v778
      %v780 = vpop.f32.mrb[0].mxu0
      %781 = vdwg.mxu0
      %v782 = vadd.f32 %v406, %v764
      %v783 = vadd.f32 %v407, %v769
      %v784 = vmul.f32 %v782, 0.70710677
      %v785 = vmul.f32 %v783, 0.70710677
      %786 = vst [vmem:[%s397] sm:$0xff] %v784
      %787 = vst [vmem:[%s397 + $0x8] sm:$0xff] %v785
      %788 = vst [vmem:[%s405] sm:$0xff] %v774
      %789 = vst [vmem:[%s405 + $0x8] sm:$0xff] %v779
      %p790 = scmp.lt.s32.totalorder %s24, 1
      %s791 = scalar_select %p790, %s24, 1
      %p792 = scmp.lt.s32.totalorder %s25, 0
      %s793 = scalar_select %p792, %s25, 0
      %s794 = smul.addr %s791, 2
      %s795 = sadd.s32 %s793, %s794
      %s796 = smul.addr %s795, 8
      %s797 = scalar_lea.vmem %s7, %s796
      %p798 = scmp.lt.s32.totalorder %s24, 1
      %s799 = scalar_select %p798, %s24, 1
      %p800 = scmp.lt.s32.totalorder %s25, 0
      %s801 = scalar_select %p800, %s25, 0
      %s802 = smul.addr %s799, 2
      %s803 = sadd.s32 %s801, %s802
      %s804 = smul.addr %s803, 8
      %s805 = scalar_lea.vmem %s8, %s804
      // Predicated region
      $region49: #{noise_project.1} parent=47 // pred_check
        %p806 = pneg %p218
      $region50: #{noise_project.1} parent=47 // pred_check_branch
        %808 = sbr.rel (%p806) target = $region52
      $region51: #{noise_project.1} parent=47 // pred_region
        _
      $region52: #{noise_project.1} parent=47 // pred_fallthru
        _
      // Predicated region
      $region53: #{noise_project.1} parent=47 // pred_check
        %p809 = pneg %p246
      $region54: #{noise_project.1} parent=47 // pred_check_branch
        %811 = sbr.rel (%p809) target = $region56
      $region55: #{noise_project.1} parent=47 // pred_region
        _
      $region56: #{noise_project.1} parent=47 // pred_fallthru
        _
    $region48: #{noise_project.1} parent=5 // pred_fallthru
      _
    %p812 = scmp.le.s32.totalorder 2, %s15
    // Predicated region
    $region57: #{noise_project.1} parent=5 // pred_check
      %p813 = pneg %p812
    $region58: #{noise_project.1} parent=5 // pred_check_branch
      %815 = sbr.rel (%p813) target = $region60
    $region59: #{noise_project.1} parent=5 // pred_region
      %s816 = ssub.s32 %s15, 2
      // Predicated region
      $region61: #{noise_project.1} parent=59 // pred_check
        %p817 = pneg %p224
      $region62: #{noise_project.1} parent=59 // pred_check_branch
        %819 = sbr.rel (%p817) target = $region64
      $region63: #{noise_project.1} parent=59 // pred_region
        %p820 = scmp.lt.s32.totalorder %s26, 1
        %s821 = scalar_select %p820, %s26, 1
        %p822 = scmp.lt.s32.totalorder %s27, 0
        %s823 = scalar_select %p822, %s27, 0
        %s824 = smul.addr %s821, 2
        %s825 = sadd.s32 %s823, %s824
        %s826 = smul.addr %s825, 8
        %s827 = scalar_lea.vmem %s7, %s826
      $region64: #{noise_project.1} parent=59 // pred_fallthru
        _
      // Predicated region
      $region65: #{noise_project.1} parent=59 // pred_check
        %p828 = pneg %p252
      $region66: #{noise_project.1} parent=59 // pred_check_branch
        %830 = sbr.rel (%p828) target = $region68
      $region67: #{noise_project.1} parent=59 // pred_region
        %p831 = scmp.lt.s32.totalorder %s26, 1
        %s832 = scalar_select %p831, %s26, 1
        %p833 = scmp.lt.s32.totalorder %s27, 0
        %s834 = scalar_select %p833, %s27, 0
        %s835 = smul.addr %s832, 2
        %s836 = sadd.s32 %s834, %s835
        %s837 = smul.addr %s836, 8
        %s838 = scalar_lea.vmem %s8, %s837
      $region68: #{noise_project.1} parent=59 // pred_fallthru
        _
    $region60: #{noise_project.1} parent=5 // pred_fallthru
      _
  $region6: #{noise_project.1} parent=0 // loop_footer
    %s19 = sadd.s32 1, %s15
  $region7: #{noise_project.1} parent=0 // loop_footer_branch
    %14 = sbr.rel target = $region3
  $region8: #{noise_project.1} parent=0 // loop_exit
    _

</llo_original>
